<compile_context>
chip_gen: v5e
topology: v5e:2x2
jax: 0.10.0
libtpu: 0.0.40
codegen_flags: <defaults>
</compile_context>

<pallas_src>
import jax
import jax.numpy as jnp
import numpy as np
from jax.experimental import pallas as pl
from jax.experimental.pallas import tpu as pltpu

# ----------------------------- problem sizes --------------------------------
B = 2          # batch
TH = 16        # motion sequence length (h.shape[1]); patch_size = 1
TC = 8         # condition sequence length (c.shape[1])
D_IN = 32      # motion feature dim (input_feats)
D = 64         # base_model.latent_dim
F = 48         # control_cond_feats (condition feature dim)
N_COPY = 2     # copy_blocks_num  (both controlnet blocks folded into the kernel)
N_BLOCKS = 4   # total base decoder blocks (all identity stand-ins here)

M = B * TH     # flattened (batch*time) rows processed as one block


# ------------------------------- fused kernel --------------------------------
def _fused_kernel(x_ref, c_ref, pe_ref, cm_ref,
                  wj_ref, bj_ref, wcc_ref, bcc_ref,
                  wb0_ref, bb0_ref, wa_ref, ba_ref,
                  wout_ref, bout_ref, o_ref):
    """Whole ControlT2MHalf forward (identity base blocks) on a (M, .) slab.

    x_ref  : (M, D_IN)  flattened motion
    c_ref  : (M, F)     flattened condition, zero-padded along time to TH
    pe_ref : (M, D)     sequence_embedding[:TH] tiled over batch
    cm_ref : (M, 1)     per-row gate = (row_t < TC) * (cond_type % 10 > 0)
    """
    f32 = jnp.float32
    x = x_ref[...]
    pe = pe_ref[...]

    # h = joint_embed(motion) + sequence_embedding[:, :T, :]
    h = jnp.dot(x, wj_ref[...], preferred_element_type=f32) + bj_ref[...] + pe

    # forward_c + condition_cfg gate:
    #   bias + pe only apply to the first TC rows; padded rows must be exactly 0.
    #   cm already folds both the row-validity mask and the cfg gate.
    c = (jnp.dot(c_ref[...], wcc_ref[...], preferred_element_type=f32)
         + bcc_ref[...] + pe) * cm_ref[...]

    # controlnet block 0: c = copied_block(h + before_proj(c))   (identity copied_block)
    c = h + jnp.dot(c, wb0_ref[...], preferred_element_type=f32) + bb0_ref[...]

    # after_proj of block 0 and block 1, fused (identity copied_block / base blocks):
    #   h = h + c@Wa0 + ba0 + c@Wa1 + ba1  ==  h + c@(Wa0+Wa1) + (ba0+ba1)
    h = h + jnp.dot(c, wa_ref[...], preferred_element_type=f32) + ba_ref[...]

    # output = motion + base_model.out(h)   (use_residual_connection)
    o_ref[...] = (x + jnp.dot(h, wout_ref[...], preferred_element_type=f32)
                  + bout_ref[...]).astype(o_ref.dtype)


# --------------------------- model forward (train path) ----------------------
@jax.jit
def control_t2m_half_forward(motion, c_raw, cond_type, params):
    """forward() + forward_train() of ControlT2MHalf with identity base blocks."""
    P = params

    # ---- cheap one-time prep (plain JAX, fused into the same jit) ----
    x2 = motion.reshape(M, D_IN)
    # zero-pad condition along time to TH, then flatten (padded rows stay exact 0
    # inside the kernel thanks to the row mask below — no in-kernel concat).
    c_pad = jnp.concatenate(
        [c_raw, jnp.zeros((B, TH - TC, F), c_raw.dtype)], axis=1).reshape(M, F)
    pe2 = jnp.tile(P["pe"][:TH], (B, 1))                               # (M, D)
    gate = (cond_type % 10 > 0).astype(jnp.float32)                    # (B,1,1) cfg gate
    row_valid = (jnp.arange(TH) < TC).astype(jnp.float32)[None, :, None]
    cmask = jnp.broadcast_to(gate * row_valid, (B, TH, 1)).reshape(M, 1)

    # TODO(synk): the Wa0+Wa1 / ba0+ba1 fusion is only valid while copied_block and
    # the base decoder blocks are identity stand-ins; revert to two separate
    # after_proj matmuls once the real DecoderLayer is plugged in.
    wa = P["Wa0"] + P["Wa1"]
    ba = (P["ba0"] + P["ba1"]).reshape(1, D)

    out2 = pl.pallas_call(
        _fused_kernel,
        out_shape=jax.ShapeDtypeStruct((M, D_IN), motion.dtype),
        grid=(1,),  # single block: whole problem fits in VMEM; no per-step overhead
        in_specs=[
            pl.BlockSpec((M, D_IN), lambda i: (0, 0)),   # x (flattened motion)
            pl.BlockSpec((M, F),    lambda i: (0, 0)),   # condition (padded)
            pl.BlockSpec((M, D),    lambda i: (0, 0)),   # pos-emb tiled
            pl.BlockSpec((M, 1),    lambda i: (0, 0)),   # row mask * cfg gate
            pl.BlockSpec((D_IN, D), lambda i: (0, 0)),   # Wj  (joint_embed)
            pl.BlockSpec((1, D),    lambda i: (0, 0)),   # bj
            pl.BlockSpec((F, D),    lambda i: (0, 0)),   # Wcc (control_cond_input)
            pl.BlockSpec((1, D),    lambda i: (0, 0)),   # bcc
            pl.BlockSpec((D, D),    lambda i: (0, 0)),   # Wb0 (before_proj)
            pl.BlockSpec((1, D),    lambda i: (0, 0)),   # bb0
            pl.BlockSpec((D, D),    lambda i: (0, 0)),   # Wa0 + Wa1 (after_proj, fused)
            pl.BlockSpec((1, D),    lambda i: (0, 0)),   # ba0 + ba1
            pl.BlockSpec((D, D_IN), lambda i: (0, 0)),   # Wout (base_model.out)
            pl.BlockSpec((1, D_IN), lambda i: (0, 0)),   # bout
        ],
        out_specs=pl.BlockSpec((M, D_IN), lambda i: (0, 0)),
        input_output_aliases={0: 0},   # output written onto the flattened-motion buffer
        compiler_params=pltpu.CompilerParams(
            dimension_semantics=("arbitrary",)),  # single core; work far too small to shard
    )(x2, c_pad, pe2, cmask,
      P["Wj"], P["bj"].reshape(1, D),
      P["Wcc"], P["bcc"].reshape(1, D),
      P["Wb0"], P["bb0"].reshape(1, D),
      wa, ba,
      P["Wout"], P["bout"].reshape(1, D_IN))

    return out2.reshape(B, TH, D_IN)


# --------------------------- pure-JAX reference -------------------------------
def reference_forward(motion, c_raw, cond_type, params):
    P = params
    hp = jax.lax.Precision.HIGHEST
    dot = lambda a, b: jnp.matmul(a, b, precision=hp)

    h = dot(motion, P["Wj"]) + P["bj"] + P["pe"][:TH]
    cp = dot(c_raw, P["Wcc"]) + P["bcc"] + P["pe"][:TC]
    c = jnp.concatenate([cp, jnp.zeros((B, TH - TC, D), jnp.float32)], axis=1)

    gate = (cond_type % 10 > 0).astype(jnp.float32)
    c = c * gate
    c = h + dot(c, P["Wb0"]) + P["bb0"]           # block 0: x + before_proj(c); identity copied_block
    h = h + dot(c, P["Wa0"]) + P["ba0"]           # h + after_proj(c); identity base block
    h = h + dot(c, P["Wa1"]) + P["ba1"]           # block 1: identity copied_block, after_proj
    return motion + (dot(h, P["Wout"]) + P["bout"])


# ----------------------------------- main ------------------------------------
if __name__ == "__main__":
    key = jax.random.PRNGKey(0)
    keys = jax.random.split(key, 16)
    s = 0.05

    params = {
        "Wj":  s * jax.random.normal(keys[0], (D_IN, D), jnp.float32),   # joint_embed
        "bj":  s * jax.random.normal(keys[1], (D,), jnp.float32),
        "pe":  s * jax.random.normal(keys[2], (TH, D), jnp.float32),     # sequence_embedding
        "Wcc": s * jax.random.normal(keys[3], (F, D), jnp.float32),      # control_cond_input (torch: zeros)
        "bcc": s * jax.random.normal(keys[4], (D,), jnp.float32),
        "Wb0": s * jax.random.normal(keys[5], (D, D), jnp.float32),      # controlnet[0].before_proj (torch: zeros)
        "bb0": s * jax.random.normal(keys[6], (D,), jnp.float32),
        "Wa0": s * jax.random.normal(keys[7], (D, D), jnp.float32),      # controlnet[0].after_proj (torch: zeros)
        "ba0": s * jax.random.normal(keys[8], (D,), jnp.float32),
        "Wa1": s * jax.random.normal(keys[9], (D, D), jnp.float32),      # controlnet[1].after_proj (torch: zeros)
        "ba1": s * jax.random.normal(keys[10], (D,), jnp.float32),
        "Wout": s * jax.random.normal(keys[11], (D, D_IN), jnp.float32), # base_model.out
        "bout": s * jax.random.normal(keys[12], (D_IN,), jnp.float32),
    }

    motion = jax.random.normal(keys[13], (B, TH, D_IN), jnp.float32)
    c_raw = jax.random.normal(keys[14], (B, TC, F), jnp.float32)
    # forward_train uses torch.randint(0, 100, (B, 1, 1)); deterministic here.
    cond_type = jax.random.randint(keys[15], (B, 1, 1), 0, 100)

    out = control_t2m_half_forward(motion, c_raw, cond_type, params)
    out = jax.block_until_ready(out)

    ref = reference_forward(motion, c_raw, cond_type, params)
    np.testing.assert_allclose(np.asarray(out), np.asarray(ref), rtol=1e-3, atol=1e-3)

    print("KERNEL_OK")
</pallas_src>

<mosaic_0001>
module attributes {stable_mosaic.version = 11 : i64} {
  func.func @_fused_kernel(%arg0: i32, %arg1: memref<32x32xf32, #tpu.memory_space<vmem>>, %arg2: memref<32x48xf32, #tpu.memory_space<vmem>>, %arg3: memref<32x64xf32, #tpu.memory_space<vmem>>, %arg4: memref<32x1xf32, #tpu.memory_space<vmem>>, %arg5: memref<32x64xf32, #tpu.memory_space<vmem>>, %arg6: memref<1x64xf32, #tpu.memory_space<vmem>>, %arg7: memref<48x64xf32, #tpu.memory_space<vmem>>, %arg8: memref<1x64xf32, #tpu.memory_space<vmem>>, %arg9: memref<64x64xf32, #tpu.memory_space<vmem>>, %arg10: memref<1x64xf32, #tpu.memory_space<vmem>>, %arg11: memref<64x64xf32, #tpu.memory_space<vmem>>, %arg12: memref<1x64xf32, #tpu.memory_space<vmem>>, %arg13: memref<64x32xf32, #tpu.memory_space<vmem>>, %arg14: memref<1x32xf32, #tpu.memory_space<vmem>>, %arg15: memref<32x32xf32, #tpu.memory_space<vmem>>) attributes {dimension_semantics = [#tpu.dimension_semantics<arbitrary>], iteration_bounds = array<i64: 1>, scalar_prefetch = 0 : i64, scratch_operands = 0 : i64, tpu.core_type = #tpu.core_type<tc>, window_params = [{pipeline_mode = #tpu.pipeline_mode<synchronous>, transform_indices = @transform_0, window_bounds = array<i64: 32, 32>}, {pipeline_mode = #tpu.pipeline_mode<synchronous>, transform_indices = @transform_1, window_bounds = array<i64: 32, 48>}, {pipeline_mode = #tpu.pipeline_mode<synchronous>, transform_indices = @transform_2, window_bounds = array<i64: 32, 64>}, {pipeline_mode = #tpu.pipeline_mode<synchronous>, transform_indices = @transform_3, window_bounds = array<i64: 32, 1>}, {pipeline_mode = #tpu.pipeline_mode<synchronous>, transform_indices = @transform_4, window_bounds = array<i64: 32, 64>}, {pipeline_mode = #tpu.pipeline_mode<synchronous>, transform_indices = @transform_5, window_bounds = array<i64: 1, 64>}, {pipeline_mode = #tpu.pipeline_mode<synchronous>, transform_indices = @transform_6, window_bounds = array<i64: 48, 64>}, {pipeline_mode = #tpu.pipeline_mode<synchronous>, transform_indices = @transform_7, window_bounds = array<i64: 1, 64>}, {pipeline_mode = #tpu.pipeline_mode<synchronous>, transform_indices = @transform_8, window_bounds = array<i64: 64, 64>}, {pipeline_mode = #tpu.pipeline_mode<synchronous>, transform_indices = @transform_9, window_bounds = array<i64: 1, 64>}, {pipeline_mode = #tpu.pipeline_mode<synchronous>, transform_indices = @transform_10, window_bounds = array<i64: 64, 64>}, {pipeline_mode = #tpu.pipeline_mode<synchronous>, transform_indices = @transform_11, window_bounds = array<i64: 1, 64>}, {pipeline_mode = #tpu.pipeline_mode<synchronous>, transform_indices = @transform_12, window_bounds = array<i64: 64, 32>}, {pipeline_mode = #tpu.pipeline_mode<synchronous>, transform_indices = @transform_13, window_bounds = array<i64: 1, 32>}, {pipeline_mode = #tpu.pipeline_mode<synchronous>, transform_indices = @transform_14, window_bounds = array<i64: 32, 32>}]} {
    %c0 = arith.constant 0 : index
    %c0_0 = arith.constant 0 : index
    %0 = vector.load %arg1[%c0, %c0_0] : memref<32x32xf32, #tpu.memory_space<vmem>>, vector<32x32xf32>
    %c0_1 = arith.constant 0 : index
    %c0_2 = arith.constant 0 : index
    %1 = vector.load %arg3[%c0_1, %c0_2] : memref<32x64xf32, #tpu.memory_space<vmem>>, vector<32x64xf32>
    %c0_3 = arith.constant 0 : index
    %c0_4 = arith.constant 0 : index
    %2 = vector.load %arg5[%c0_3, %c0_4] : memref<32x64xf32, #tpu.memory_space<vmem>>, vector<32x64xf32>
    %cst = arith.constant dense<0.000000e+00> : vector<32x64xf32>
    %3 = tpu.matmul %0, %2, %cst {dimension_numbers = #tpu.dot_dimension_numbers<[1], [0], [0], [1], [0, 0, 1, 1], [], []>} : vector<32x32xf32>, vector<32x64xf32>, vector<32x64xf32> -> vector<32x64xf32>
    %c0_5 = arith.constant 0 : index
    %c0_6 = arith.constant 0 : index
    %4 = vector.load %arg6[%c0_5, %c0_6] : memref<1x64xf32, #tpu.memory_space<vmem>>, vector<1x64xf32>
    %5 = vector.broadcast %4 : vector<1x64xf32> to vector<32x64xf32>
    %6 = arith.addf %3, %5 : vector<32x64xf32>
    %7 = arith.addf %6, %1 : vector<32x64xf32>
    %c0_7 = arith.constant 0 : index
    %c0_8 = arith.constant 0 : index
    %8 = vector.load %arg2[%c0_7, %c0_8] : memref<32x48xf32, #tpu.memory_space<vmem>>, vector<32x48xf32>
    %c0_9 = arith.constant 0 : index
    %c0_10 = arith.constant 0 : index
    %9 = vector.load %arg7[%c0_9, %c0_10] : memref<48x64xf32, #tpu.memory_space<vmem>>, vector<48x64xf32>
    %cst_11 = arith.constant dense<0.000000e+00> : vector<32x64xf32>
    %10 = tpu.matmul %8, %9, %cst_11 {dimension_numbers = #tpu.dot_dimension_numbers<[1], [0], [0], [1], [0, 0, 1, 1], [], []>} : vector<32x48xf32>, vector<48x64xf32>, vector<32x64xf32> -> vector<32x64xf32>
    %c0_12 = arith.constant 0 : index
    %c0_13 = arith.constant 0 : index
    %11 = vector.load %arg8[%c0_12, %c0_13] : memref<1x64xf32, #tpu.memory_space<vmem>>, vector<1x64xf32>
    %12 = vector.broadcast %11 : vector<1x64xf32> to vector<32x64xf32>
    %13 = arith.addf %10, %12 : vector<32x64xf32>
    %14 = arith.addf %13, %1 : vector<32x64xf32>
    %c0_14 = arith.constant 0 : index
    %c0_15 = arith.constant 0 : index
    %15 = vector.load %arg4[%c0_14, %c0_15] : memref<32x1xf32, #tpu.memory_space<vmem>>, vector<32x1xf32>
    %16 = vector.broadcast %15 : vector<32x1xf32> to vector<32x64xf32>
    %17 = arith.mulf %14, %16 : vector<32x64xf32>
    %c0_16 = arith.constant 0 : index
    %c0_17 = arith.constant 0 : index
    %18 = vector.load %arg9[%c0_16, %c0_17] : memref<64x64xf32, #tpu.memory_space<vmem>>, vector<64x64xf32>
    %cst_18 = arith.constant dense<0.000000e+00> : vector<32x64xf32>
    %19 = tpu.matmul %17, %18, %cst_18 {dimension_numbers = #tpu.dot_dimension_numbers<[1], [0], [0], [1], [0, 0, 1, 1], [], []>} : vector<32x64xf32>, vector<64x64xf32>, vector<32x64xf32> -> vector<32x64xf32>
    %20 = arith.addf %7, %19 : vector<32x64xf32>
    %c0_19 = arith.constant 0 : index
    %c0_20 = arith.constant 0 : index
    %21 = vector.load %arg10[%c0_19, %c0_20] : memref<1x64xf32, #tpu.memory_space<vmem>>, vector<1x64xf32>
    %22 = vector.broadcast %21 : vector<1x64xf32> to vector<32x64xf32>
    %23 = arith.addf %20, %22 : vector<32x64xf32>
    %c0_21 = arith.constant 0 : index
    %c0_22 = arith.constant 0 : index
    %24 = vector.load %arg11[%c0_21, %c0_22] : memref<64x64xf32, #tpu.memory_space<vmem>>, vector<64x64xf32>
    %cst_23 = arith.constant dense<0.000000e+00> : vector<32x64xf32>
    %25 = tpu.matmul %23, %24, %cst_23 {dimension_numbers = #tpu.dot_dimension_numbers<[1], [0], [0], [1], [0, 0, 1, 1], [], []>} : vector<32x64xf32>, vector<64x64xf32>, vector<32x64xf32> -> vector<32x64xf32>
    %26 = arith.addf %7, %25 : vector<32x64xf32>
    %c0_24 = arith.constant 0 : index
    %c0_25 = arith.constant 0 : index
    %27 = vector.load %arg12[%c0_24, %c0_25] : memref<1x64xf32, #tpu.memory_space<vmem>>, vector<1x64xf32>
    %28 = vector.broadcast %27 : vector<1x64xf32> to vector<32x64xf32>
    %29 = arith.addf %26, %28 : vector<32x64xf32>
    %c0_26 = arith.constant 0 : index
    %c0_27 = arith.constant 0 : index
    %30 = vector.load %arg13[%c0_26, %c0_27] : memref<64x32xf32, #tpu.memory_space<vmem>>, vector<64x32xf32>
    %cst_28 = arith.constant dense<0.000000e+00> : vector<32x32xf32>
    %31 = tpu.matmul %29, %30, %cst_28 {dimension_numbers = #tpu.dot_dimension_numbers<[1], [0], [0], [1], [0, 0, 1, 1], [], []>} : vector<32x64xf32>, vector<64x32xf32>, vector<32x32xf32> -> vector<32x32xf32>
    %32 = arith.addf %0, %31 : vector<32x32xf32>
    %c0_29 = arith.constant 0 : index
    %c0_30 = arith.constant 0 : index
    %33 = vector.load %arg14[%c0_29, %c0_30] : memref<1x32xf32, #tpu.memory_space<vmem>>, vector<1x32xf32>
    %34 = vector.broadcast %33 : vector<1x32xf32> to vector<32x32xf32>
    %35 = arith.addf %32, %34 : vector<32x32xf32>
    %c0_31 = arith.constant 0 : index
    %c0_32 = arith.constant 0 : index
    %36 = vector.load %arg15[%c0_31, %c0_32] : memref<32x32xf32, #tpu.memory_space<vmem>>, vector<32x32xf32>
    tpu.vector_store %arg15[%c0_31, %c0_32], %35 {strides = array<i32>} : memref<32x32xf32, #tpu.memory_space<vmem>>, vector<32x32xf32>,
    return
  }
  func.func @transform_0(%arg0: i32) -> (i32, i32) {
    %c0_i32 = arith.constant 0 : i32
    %c0_i32_0 = arith.constant 0 : i32
    %c0_i32_1 = arith.constant 0 : i32
    return %c0_i32, %c0_i32_0 : i32, i32
  }
  func.func @transform_1(%arg0: i32) -> (i32, i32) {
    %c0_i32 = arith.constant 0 : i32
    %c0_i32_0 = arith.constant 0 : i32
    %c0_i32_1 = arith.constant 0 : i32
    return %c0_i32, %c0_i32_0 : i32, i32
  }
  func.func @transform_2(%arg0: i32) -> (i32, i32) {
    %c0_i32 = arith.constant 0 : i32
    %c0_i32_0 = arith.constant 0 : i32
    %c0_i32_1 = arith.constant 0 : i32
    return %c0_i32, %c0_i32_0 : i32, i32
  }
  func.func @transform_3(%arg0: i32) -> (i32, i32) {
    %c0_i32 = arith.constant 0 : i32
    %c0_i32_0 = arith.constant 0 : i32
    %c0_i32_1 = arith.constant 0 : i32
    return %c0_i32, %c0_i32_0 : i32, i32
  }
  func.func @transform_4(%arg0: i32) -> (i32, i32) {
    %c0_i32 = arith.constant 0 : i32
    %c0_i32_0 = arith.constant 0 : i32
    %c0_i32_1 = arith.constant 0 : i32
    return %c0_i32, %c0_i32_0 : i32, i32
  }
  func.func @transform_5(%arg0: i32) -> (i32, i32) {
    %c0_i32 = arith.constant 0 : i32
    %c0_i32_0 = arith.constant 0 : i32
    %c0_i32_1 = arith.constant 0 : i32
    return %c0_i32, %c0_i32_0 : i32, i32
  }
  func.func @transform_6(%arg0: i32) -> (i32, i32) {
    %c0_i32 = arith.constant 0 : i32
    %c0_i32_0 = arith.constant 0 : i32
    %c0_i32_1 = arith.constant 0 : i32
    return %c0_i32, %c0_i32_0 : i32, i32
  }
  func.func @transform_7(%arg0: i32) -> (i32, i32) {
    %c0_i32 = arith.constant 0 : i32
    %c0_i32_0 = arith.constant 0 : i32
    %c0_i32_1 = arith.constant 0 : i32
    return %c0_i32, %c0_i32_0 : i32, i32
  }
  func.func @transform_8(%arg0: i32) -> (i32, i32) {
    %c0_i32 = arith.constant 0 : i32
    %c0_i32_0 = arith.constant 0 : i32
    %c0_i32_1 = arith.constant 0 : i32
    return %c0_i32, %c0_i32_0 : i32, i32
  }
  func.func @transform_9(%arg0: i32) -> (i32, i32) {
    %c0_i32 = arith.constant 0 : i32
    %c0_i32_0 = arith.constant 0 : i32
    %c0_i32_1 = arith.constant 0 : i32
    return %c0_i32, %c0_i32_0 : i32, i32
  }
  func.func @transform_10(%arg0: i32) -> (i32, i32) {
    %c0_i32 = arith.constant 0 : i32
    %c0_i32_0 = arith.constant 0 : i32
    %c0_i32_1 = arith.constant 0 : i32
    return %c0_i32, %c0_i32_0 : i32, i32
  }
  func.func @transform_11(%arg0: i32) -> (i32, i32) {
    %c0_i32 = arith.constant 0 : i32
    %c0_i32_0 = arith.constant 0 : i32
    %c0_i32_1 = arith.constant 0 : i32
    return %c0_i32, %c0_i32_0 : i32, i32
  }
  func.func @transform_12(%arg0: i32) -> (i32, i32) {
    %c0_i32 = arith.constant 0 : i32
    %c0_i32_0 = arith.constant 0 : i32
    %c0_i32_1 = arith.constant 0 : i32
    return %c0_i32, %c0_i32_0 : i32, i32
  }
  func.func @transform_13(%arg0: i32) -> (i32, i32) {
    %c0_i32 = arith.constant 0 : i32
    %c0_i32_0 = arith.constant 0 : i32
    %c0_i32_1 = arith.constant 0 : i32
    return %c0_i32, %c0_i32_0 : i32, i32
  }
  func.func @transform_14(%arg0: i32) -> (i32, i32) {
    %c0_i32 = arith.constant 0 : i32
    %c0_i32_0 = arith.constant 0 : i32
    %c0_i32_1 = arith.constant 0 : i32
    return %c0_i32, %c0_i32_0 : i32, i32
  }
}

</mosaic_0001>

<llo_original>
// kernel: control_t2m_half_forward.1
$region0: #{control_t2m_half_forward.1}
  #allocation0 [shape = 'u32[]', space=smem, size = 0x4, offset = 0x4, fixed_abs, tag = 'smem constant byte address 0x4 - core index']
  #allocation1 [shape = 'u32[72,128]{1,0:T(1,128)}', space=vmem, size = 0x9000, scoped, tag = 'internal scratch']
  %s0 = inlined_call_operand.vmem [shape: f32[32,32], index: 0, kind: input, shape index: {}, may-alias: {0,14}]
  %s1 = inlined_call_operand.vmem [shape: f32[32,48], index: 1, kind: input, shape index: {}]
  %s2 = inlined_call_operand.vmem [shape: f32[32,64], index: 2, kind: input, shape index: {}]
  %s3 = inlined_call_operand.vmem [shape: f32[32,1], index: 3, kind: input, shape index: {}]
  %s4 = inlined_call_operand.vmem [shape: f32[32,64], index: 4, kind: input, shape index: {}]
  %s5 = inlined_call_operand.vmem [shape: f32[1,64], index: 5, kind: input, shape index: {}]
  %s6 = inlined_call_operand.vmem [shape: f32[48,64], index: 6, kind: input, shape index: {}]
  %s7 = inlined_call_operand.vmem [shape: f32[1,64], index: 7, kind: input, shape index: {}]
  %s8 = inlined_call_operand.vmem [shape: f32[64,64], index: 8, kind: input, shape index: {}]
  %s9 = inlined_call_operand.vmem [shape: f32[1,64], index: 9, kind: input, shape index: {}]
  %s10 = inlined_call_operand.vmem [shape: f32[64,64], index: 10, kind: input, shape index: {}]
  %s11 = inlined_call_operand.vmem [shape: f32[1,64], index: 11, kind: input, shape index: {}]
  %s12 = inlined_call_operand.vmem [shape: f32[64,32], index: 12, kind: input, shape index: {}]
  %s13 = inlined_call_operand.vmem [shape: f32[1,32], index: 13, kind: input, shape index: {}]
  %s14 = inlined_call_operand.vmem [shape: f32[32,32], index: 14, kind: output, shape index: {}, may-alias: {0,14}]
  %s15 = sld [smem:[#allocation0]]
  $region66: #{control_t2m_half_forward.1} parent=0
    _
  %s17 = ssub.s32 1, %s15
  %s18 = scalar_select 0, %s17, %s15
  // Predicated region
  $region2: #{control_t2m_half_forward.1} parent=0 // pred_check
    _
  $region3: #{control_t2m_half_forward.1} parent=0 // pred_check_branch
    %20 = sbr.rel (0) target = $region5
  $region4: #{control_t2m_half_forward.1} parent=0 // pred_region
    _
  $region5: #{control_t2m_half_forward.1} parent=0 // pred_fallthru
    _
  // Predicated region
  $region6: #{control_t2m_half_forward.1} parent=0 // pred_check
    _
  $region7: #{control_t2m_half_forward.1} parent=0 // pred_check_branch
    %22 = sbr.rel (0) target = $region9
  $region8: #{control_t2m_half_forward.1} parent=0 // pred_region
    _
  $region9: #{control_t2m_half_forward.1} parent=0 // pred_fallthru
    _
  // Predicated region
  $region10: #{control_t2m_half_forward.1} parent=0 // pred_check
    _
  $region11: #{control_t2m_half_forward.1} parent=0 // pred_check_branch
    %24 = sbr.rel (0) target = $region13
  $region12: #{control_t2m_half_forward.1} parent=0 // pred_region
    _
  $region13: #{control_t2m_half_forward.1} parent=0 // pred_fallthru
    _
  // Predicated region
  $region14: #{control_t2m_half_forward.1} parent=0 // pred_check
    _
  $region15: #{control_t2m_half_forward.1} parent=0 // pred_check_branch
    %26 = sbr.rel (0) target = $region17
  $region16: #{control_t2m_half_forward.1} parent=0 // pred_region
    _
  $region17: #{control_t2m_half_forward.1} parent=0 // pred_fallthru
    _
  // Predicated region
  $region18: #{control_t2m_half_forward.1} parent=0 // pred_check
    _
  $region19: #{control_t2m_half_forward.1} parent=0 // pred_check_branch
    %28 = sbr.rel (0) target = $region21
  $region20: #{control_t2m_half_forward.1} parent=0 // pred_region
    _
  $region21: #{control_t2m_half_forward.1} parent=0 // pred_fallthru
    _
  // Predicated region
  $region22: #{control_t2m_half_forward.1} parent=0 // pred_check
    _
  $region23: #{control_t2m_half_forward.1} parent=0 // pred_check_branch
    %30 = sbr.rel (0) target = $region25
  $region24: #{control_t2m_half_forward.1} parent=0 // pred_region
    _
  $region25: #{control_t2m_half_forward.1} parent=0 // pred_fallthru
    _
  // Predicated region
  $region26: #{control_t2m_half_forward.1} parent=0 // pred_check
    _
  $region27: #{control_t2m_half_forward.1} parent=0 // pred_check_branch
    %32 = sbr.rel (0) target = $region29
  $region28: #{control_t2m_half_forward.1} parent=0 // pred_region
    _
  $region29: #{control_t2m_half_forward.1} parent=0 // pred_fallthru
    _
  // Predicated region
  $region30: #{control_t2m_half_forward.1} parent=0 // pred_check
    _
  $region31: #{control_t2m_half_forward.1} parent=0 // pred_check_branch
    %34 = sbr.rel (0) target = $region33
  $region32: #{control_t2m_half_forward.1} parent=0 // pred_region
    _
  $region33: #{control_t2m_half_forward.1} parent=0 // pred_fallthru
    _
  // Predicated region
  $region34: #{control_t2m_half_forward.1} parent=0 // pred_check
    _
  $region35: #{control_t2m_half_forward.1} parent=0 // pred_check_branch
    %36 = sbr.rel (0) target = $region37
  $region36: #{control_t2m_half_forward.1} parent=0 // pred_region
    _
  $region37: #{control_t2m_half_forward.1} parent=0 // pred_fallthru
    _
  // Predicated region
  $region38: #{control_t2m_half_forward.1} parent=0 // pred_check
    _
  $region39: #{control_t2m_half_forward.1} parent=0 // pred_check_branch
    %38 = sbr.rel (0) target = $region41
  $region40: #{control_t2m_half_forward.1} parent=0 // pred_region
    _
  $region41: #{control_t2m_half_forward.1} parent=0 // pred_fallthru
    _
  // Predicated region
  $region42: #{control_t2m_half_forward.1} parent=0 // pred_check
    _
  $region43: #{control_t2m_half_forward.1} parent=0 // pred_check_branch
    %40 = sbr.rel (0) target = $region45
  $region44: #{control_t2m_half_forward.1} parent=0 // pred_region
    _
  $region45: #{control_t2m_half_forward.1} parent=0 // pred_fallthru
    _
  // Predicated region
  $region46: #{control_t2m_half_forward.1} parent=0 // pred_check
    _
  $region47: #{control_t2m_half_forward.1} parent=0 // pred_check_branch
    %42 = sbr.rel (0) target = $region49
  $region48: #{control_t2m_half_forward.1} parent=0 // pred_region
    _
  $region49: #{control_t2m_half_forward.1} parent=0 // pred_fallthru
    _
  // Predicated region
  $region50: #{control_t2m_half_forward.1} parent=0 // pred_check
    _
  $region51: #{control_t2m_half_forward.1} parent=0 // pred_check_branch
    %44 = sbr.rel (0) target = $region53
  $region52: #{control_t2m_half_forward.1} parent=0 // pred_region
    _
  $region53: #{control_t2m_half_forward.1} parent=0 // pred_fallthru
    _
  // Predicated region
  $region54: #{control_t2m_half_forward.1} parent=0 // pred_check
    _
  $region55: #{control_t2m_half_forward.1} parent=0 // pred_check_branch
    %46 = sbr.rel (0) target = $region57
  $region56: #{control_t2m_half_forward.1} parent=0 // pred_region
    _
  $region57: #{control_t2m_half_forward.1} parent=0 // pred_fallthru
    _
  %v47 = vld [vmem:[%s0] sm:$0xff]
  %v48 = vld [vmem:[%s0 + $0x8] sm:$0xff]
  %v49 = vld [vmem:[%s0 + $0x10] sm:$0xff]
  %v50 = vld [vmem:[%s0 + $0x18] sm:$0xff]
  %v51 = vld [vmem:[%s2] sm:$0xff]
  %v52 = vld [vmem:[%s2 + $0x8] sm:$0xff]
  %v53 = vld [vmem:[%s2 + $0x10] sm:$0xff]
  %v54 = vld [vmem:[%s2 + $0x18] sm:$0xff]
  %v55 = vld [vmem:[%s4] sm:$0xff]
  %v56 = vld [vmem:[%s4 + $0x8] sm:$0xff]
  %v57 = vld [vmem:[%s4 + $0x10] sm:$0xff]
  %v58 = vld [vmem:[%s4 + $0x18] sm:$0xff]
  %v59 = vld [vmem:[%s5] sm:$0x1]
  %v61 = vperm.slane %v59, 0
  %vm63 = vcmask 261120
  %v65 = vsel %vm63, %v47, 0
  %v68 = vsel %vm63, %v48, 0
  %v71 = vsel %vm63, %v49, 0
  %v74 = vsel %vm63, %v50, 0
  %76 = vmatpush.msra.mxu0 0.0
  %77 = vmatpush.msra.mxu0 0.0
  %78 = vmatpush.msra.mxu0 0.0
  %79 = vmatpush.msra.mxu0 0.0
  %80 = vmatpush.msra.mxu0 0.0
  %81 = vmatpush.msra.mxu0 0.0
  %82 = vmatpush.msra.mxu0 0.0
  %83 = vmatpush.msra.mxu0 0.0
  %84 = vmatpush.msra.mxu0 0.0
  %85 = vmatpush.msra.mxu0 0.0
  %86 = vmatpush.msra.mxu0 0.0
  %87 = vmatpush.msra.mxu0 0.0
  %88 = vmatpush.msra.mxu0 %v58
  %89 = vmatpush.msra.mxu0 %v57
  %90 = vmatpush.msra.mxu0 %v56
  %91 = vmatpush.msra.mxu0 %v55
  %92 = vmatmul.f32.gmra.mxu0 %v65
  %v93 = vpop.f32.mrf.mxu0
  %v94 = vadd.f32 %v61, %v93
  %95 = vmatmul.f32.gmra.mxu0 %v68
  %v96 = vpop.f32.mrf.mxu0
  %v97 = vadd.f32 %v61, %v96
  %98 = vmatmul.f32.gmra.mxu0 %v71
  %v99 = vpop.f32.mrf.mxu0
  %v100 = vadd.f32 %v61, %v99
  %101 = vmatmul.f32.gmra.mxu0 %v74
  %v102 = vpop.f32.mrf.mxu0
  %v103 = vadd.f32 %v61, %v102
  %104 = vdwg.mxu0
  %v105 = vadd.f32 %v94, %v51
  %v106 = vadd.f32 %v97, %v52
  %v107 = vadd.f32 %v100, %v53
  %v108 = vadd.f32 %v103, %v54
  %v109 = vld [vmem:[%s1] sm:$0xff]
  %v110 = vld [vmem:[%s1 + $0x8] sm:$0xff]
  %v111 = vld [vmem:[%s1 + $0x10] sm:$0xff]
  %v112 = vld [vmem:[%s1 + $0x18] sm:$0xff]
  %v113 = vld [vmem:[%s6] sm:$0xff]
  %v114 = vld [vmem:[%s6 + $0x8] sm:$0xff]
  %v115 = vld [vmem:[%s6 + $0x10] sm:$0xff]
  %v116 = vld [vmem:[%s6 + $0x18] sm:$0xff]
  %v117 = vld [vmem:[%s6 + $0x20] sm:$0xff]
  %v118 = vld [vmem:[%s6 + $0x28] sm:$0xff]
  %v119 = vld [vmem:[%s7] sm:$0x1]
  %v121 = vperm.slane %v119, 0
  %vm123 = vcmask 392192
  %v125 = vsel %vm123, %v109, 0
  %v128 = vsel %vm123, %v110, 0
  %v131 = vsel %vm123, %v111, 0
  %v134 = vsel %vm123, %v112, 0
  %136 = vmatpush.msra.mxu0 0.0
  %137 = vmatpush.msra.mxu0 0.0
  %138 = vmatpush.msra.mxu0 0.0
  %139 = vmatpush.msra.mxu0 0.0
  %140 = vmatpush.msra.mxu0 0.0
  %141 = vmatpush.msra.mxu0 0.0
  %142 = vmatpush.msra.mxu0 0.0
  %143 = vmatpush.msra.mxu0 0.0
  %144 = vmatpush.msra.mxu0 0.0
  %145 = vmatpush.msra.mxu0 0.0
  %146 = vmatpush.msra.mxu0 %v118
  %147 = vmatpush.msra.mxu0 %v117
  %148 = vmatpush.msra.mxu0 %v116
  %149 = vmatpush.msra.mxu0 %v115
  %150 = vmatpush.msra.mxu0 %v114
  %151 = vmatpush.msra.mxu0 %v113
  %152 = vmatmul.f32.gmra.mxu0 %v125
  %v153 = vpop.f32.mrf.mxu0
  %v154 = vadd.f32 %v121, %v153
  %155 = vmatmul.f32.gmra.mxu0 %v128
  %v156 = vpop.f32.mrf.mxu0
  %v157 = vadd.f32 %v121, %v156
  %158 = vmatmul.f32.gmra.mxu0 %v131
  %v159 = vpop.f32.mrf.mxu0
  %v160 = vadd.f32 %v121, %v159
  %161 = vmatmul.f32.gmra.mxu0 %v134
  %v162 = vpop.f32.mrf.mxu0
  %v163 = vadd.f32 %v121, %v162
  %164 = vdwg.mxu0
  %v165 = vadd.f32 %v154, %v51
  %v166 = vadd.f32 %v157, %v52
  %v167 = vadd.f32 %v160, %v53
  %v168 = vadd.f32 %v163, %v54
  %v169 = vld [vmem:[%s3] sm:$0xff]
  %v170 = vld [vmem:[%s3 + $0x8] sm:$0xff]
  %v171 = vld [vmem:[%s3 + $0x10] sm:$0xff]
  %v172 = vld [vmem:[%s3 + $0x18] sm:$0xff]
  %174 = vset.pattern.permute.xlu0 0
  %175 = vperm.xlu0 %174, %v169
  %v176 = vpop.permute.xlu0 %175
  %179 = vset.pattern.permute.xlu0 0
  %180 = vperm.xlu0 %179, %v170
  %v181 = vpop.permute.xlu0 %180
  %184 = vset.pattern.permute.xlu0 0
  %185 = vperm.xlu0 %184, %v171
  %v186 = vpop.permute.xlu0 %185
  %189 = vset.pattern.permute.xlu0 0
  %190 = vperm.xlu0 %189, %v172
  %v191 = vpop.permute.xlu0 %190
  %v193 = vmul.f32 %v165, %v176
  %v194 = vmul.f32 %v166, %v181
  %v195 = vmul.f32 %v167, %v186
  %v196 = vmul.f32 %v168, %v191
  %v197 = vld [vmem:[%s8] sm:$0xff]
  %v198 = vld [vmem:[%s8 + $0x8] sm:$0xff]
  %v199 = vld [vmem:[%s8 + $0x10] sm:$0xff]
  %v200 = vld [vmem:[%s8 + $0x18] sm:$0xff]
  %v201 = vld [vmem:[%s8 + $0x20] sm:$0xff]
  %v202 = vld [vmem:[%s8 + $0x28] sm:$0xff]
  %v203 = vld [vmem:[%s8 + $0x30] sm:$0xff]
  %v204 = vld [vmem:[%s8 + $0x38] sm:$0xff]
  %vm205 = vcmask 523264
  %v207 = vsel %vm205, %v193, 0
  %v210 = vsel %vm205, %v194, 0
  %v213 = vsel %vm205, %v195, 0
  %v216 = vsel %vm205, %v196, 0
  %218 = vmatpush.msra.mxu0 0.0
  %219 = vmatpush.msra.mxu0 0.0
  %220 = vmatpush.msra.mxu0 0.0
  %221 = vmatpush.msra.mxu0 0.0
  %222 = vmatpush.msra.mxu0 0.0
  %223 = vmatpush.msra.mxu0 0.0
  %224 = vmatpush.msra.mxu0 0.0
  %225 = vmatpush.msra.mxu0 0.0
  %226 = vmatpush.msra.mxu0 %v204
  %227 = vmatpush.msra.mxu0 %v203
  %228 = vmatpush.msra.mxu0 %v202
  %229 = vmatpush.msra.mxu0 %v201
  %230 = vmatpush.msra.mxu0 %v200
  %231 = vmatpush.msra.mxu0 %v199
  %232 = vmatpush.msra.mxu0 %v198
  %233 = vmatpush.msra.mxu0 %v197
  %234 = vmatmul.f32.gmra.mxu0 %v207
  %v235 = vpop.f32.mrf.mxu0
  %v236 = vadd.f32 0.0, %v235
  %237 = vmatmul.f32.gmra.mxu0 %v210
  %v238 = vpop.f32.mrf.mxu0
  %v239 = vadd.f32 0.0, %v238
  %240 = vmatmul.f32.gmra.mxu0 %v213
  %v241 = vpop.f32.mrf.mxu0
  %v242 = vadd.f32 0.0, %v241
  %243 = vmatmul.f32.gmra.mxu0 %v216
  %v244 = vpop.f32.mrf.mxu0
  %v245 = vadd.f32 0.0, %v244
  %246 = vdwg.mxu0
  %v247 = vadd.f32 %v105, %v236
  %v248 = vadd.f32 %v106, %v239
  %v249 = vadd.f32 %v107, %v242
  %v250 = vadd.f32 %v108, %v245
  %v251 = vld [vmem:[%s9] sm:$0x1]
  %v253 = vperm.slane %v251, 0
  %v255 = vadd.f32 %v247, %v253
  %v256 = vadd.f32 %v248, %v253
  %v257 = vadd.f32 %v249, %v253
  %v258 = vadd.f32 %v250, %v253
  %v259 = vld [vmem:[%s10] sm:$0xff]
  %v260 = vld [vmem:[%s10 + $0x8] sm:$0xff]
  %v261 = vld [vmem:[%s10 + $0x10] sm:$0xff]
  %v262 = vld [vmem:[%s10 + $0x18] sm:$0xff]
  %v263 = vld [vmem:[%s10 + $0x20] sm:$0xff]
  %v264 = vld [vmem:[%s10 + $0x28] sm:$0xff]
  %v265 = vld [vmem:[%s10 + $0x30] sm:$0xff]
  %v266 = vld [vmem:[%s10 + $0x38] sm:$0xff]
  %v268 = vsel %vm205, %v255, 0
  %v271 = vsel %vm205, %v256, 0
  %v274 = vsel %vm205, %v257, 0
  %v277 = vsel %vm205, %v258, 0
  %279 = vmatpush.msra.mxu0 0.0
  %280 = vmatpush.msra.mxu0 0.0
  %281 = vmatpush.msra.mxu0 0.0
  %282 = vmatpush.msra.mxu0 0.0
  %283 = vmatpush.msra.mxu0 0.0
  %284 = vmatpush.msra.mxu0 0.0
  %285 = vmatpush.msra.mxu0 0.0
  %286 = vmatpush.msra.mxu0 0.0
  %287 = vmatpush.msra.mxu0 %v266
  %288 = vmatpush.msra.mxu0 %v265
  %289 = vmatpush.msra.mxu0 %v264
  %290 = vmatpush.msra.mxu0 %v263
  %291 = vmatpush.msra.mxu0 %v262
  %292 = vmatpush.msra.mxu0 %v261
  %293 = vmatpush.msra.mxu0 %v260
  %294 = vmatpush.msra.mxu0 %v259
  %295 = vmatmul.f32.gmra.mxu0 %v268
  %v296 = vpop.f32.mrf.mxu0
  %v297 = vadd.f32 0.0, %v296
  %298 = vmatmul.f32.gmra.mxu0 %v271
  %v299 = vpop.f32.mrf.mxu0
  %v300 = vadd.f32 0.0, %v299
  %301 = vmatmul.f32.gmra.mxu0 %v274
  %v302 = vpop.f32.mrf.mxu0
  %v303 = vadd.f32 0.0, %v302
  %304 = vmatmul.f32.gmra.mxu0 %v277
  %v305 = vpop.f32.mrf.mxu0
  %v306 = vadd.f32 0.0, %v305
  %307 = vdwg.mxu0
  %v308 = vadd.f32 %v105, %v297
  %v309 = vadd.f32 %v106, %v300
  %v310 = vadd.f32 %v107, %v303
  %v311 = vadd.f32 %v108, %v306
  %v312 = vld [vmem:[%s11] sm:$0x1]
  %v314 = vperm.slane %v312, 0
  %v316 = vadd.f32 %v308, %v314
  %v317 = vadd.f32 %v309, %v314
  %v318 = vadd.f32 %v310, %v314
  %v319 = vadd.f32 %v311, %v314
  %v320 = vld [vmem:[%s12] sm:$0xff]
  %v321 = vld [vmem:[%s12 + $0x8] sm:$0xff]
  %v322 = vld [vmem:[%s12 + $0x10] sm:$0xff]
  %v323 = vld [vmem:[%s12 + $0x18] sm:$0xff]
  %v324 = vld [vmem:[%s12 + $0x20] sm:$0xff]
  %v325 = vld [vmem:[%s12 + $0x28] sm:$0xff]
  %v326 = vld [vmem:[%s12 + $0x30] sm:$0xff]
  %v327 = vld [vmem:[%s12 + $0x38] sm:$0xff]
  %v329 = vsel %vm205, %v316, 0
  %v332 = vsel %vm205, %v317, 0
  %v335 = vsel %vm205, %v318, 0
  %v338 = vsel %vm205, %v319, 0
  %340 = vmatpush.msra.mxu0 0.0
  %341 = vmatpush.msra.mxu0 0.0
  %342 = vmatpush.msra.mxu0 0.0
  %343 = vmatpush.msra.mxu0 0.0
  %344 = vmatpush.msra.mxu0 0.0
  %345 = vmatpush.msra.mxu0 0.0
  %346 = vmatpush.msra.mxu0 0.0
  %347 = vmatpush.msra.mxu0 0.0
  %348 = vmatpush.msra.mxu0 %v327
  %349 = vmatpush.msra.mxu0 %v326
  %350 = vmatpush.msra.mxu0 %v325
  %351 = vmatpush.msra.mxu0 %v324
  %352 = vmatpush.msra.mxu0 %v323
  %353 = vmatpush.msra.mxu0 %v322
  %354 = vmatpush.msra.mxu0 %v321
  %355 = vmatpush.msra.mxu0 %v320
  %356 = vmatmul.f32.gmra.mxu0 %v329
  %v357 = vpop.f32.mrf.mxu0
  %v358 = vadd.f32 0.0, %v357
  %359 = vmatmul.f32.gmra.mxu0 %v332
  %v360 = vpop.f32.mrf.mxu0
  %v361 = vadd.f32 0.0, %v360
  %362 = vmatmul.f32.gmra.mxu0 %v335
  %v363 = vpop.f32.mrf.mxu0
  %v364 = vadd.f32 0.0, %v363
  %365 = vmatmul.f32.gmra.mxu0 %v338
  %v366 = vpop.f32.mrf.mxu0
  %v367 = vadd.f32 0.0, %v366
  %368 = vdwg.mxu0
  %v369 = vadd.f32 %v47, %v358
  %v370 = vadd.f32 %v48, %v361
  %v371 = vadd.f32 %v49, %v364
  %v372 = vadd.f32 %v50, %v367
  %v373 = vld [vmem:[%s13] sm:$0x1]
  %v375 = vperm.slane %v373, 0
  %v377 = vadd.f32 %v369, %v375
  %v378 = vadd.f32 %v370, %v375
  %v379 = vadd.f32 %v371, %v375
  %v380 = vadd.f32 %v372, %v375
  %381 = vst.msk [vmem:[%s14] sm:$0xff] %vm63, %v377
  %382 = vst.msk [vmem:[%s14 + $0x8] sm:$0xff] %vm63, %v378
  %383 = vst.msk [vmem:[%s14 + $0x10] sm:$0xff] %vm63, %v379
  %384 = vst.msk [vmem:[%s14 + $0x18] sm:$0xff] %vm63, %v380
  // Predicated region
  $region58: #{control_t2m_half_forward.1} parent=0 // pred_check
    _
  $region59: #{control_t2m_half_forward.1} parent=0 // pred_check_branch
    %386 = sbr.rel (0) target = $region61
  $region60: #{control_t2m_half_forward.1} parent=0 // pred_region
    _
  $region61: #{control_t2m_half_forward.1} parent=0 // pred_fallthru
    _
  // Predicated region
  $region62: #{control_t2m_half_forward.1} parent=0 // pred_check
    _
  $region63: #{control_t2m_half_forward.1} parent=0 // pred_check_branch
    %388 = sbr.rel (0) target = $region65
  $region64: #{control_t2m_half_forward.1} parent=0 // pred_region
    _
  $region65: #{control_t2m_half_forward.1} parent=0 // pred_fallthru
    _

</llo_original>
